<compile_context>
chip_gen: v5e
topology: v5e:2x2
jax: 0.10.0
libtpu: 0.0.40
codegen_flags: <defaults>
</compile_context>

<pallas_src>
import functools

import jax
import jax.numpy as jnp
from jax.experimental import pallas as pl
from jax.experimental.pallas import tpu as pltpu


# ----------------------------- Pallas kernel --------------------------------
def _encoder_kernel(c1, x_ref, at_ref, wcat_ref, w2_ref,
                    s1_ref, t1_ref, s2_ref, t2_ref, out_ref):
    # Channel-major: x (Cin, N) bf16, at (N, N) bf16 = A_norm^T,
    # wcat ((C1+C2), Cin) bf16 = [W1^T ; W_skip^T], w2 (C2, C1) bf16.
    x = x_ref[...]
    a_t = at_ref[...]

    # Fused feature transform + skip projection: one MXU dot, f32 accumulation.
    z = jnp.dot(wcat_ref[...], x, preferred_element_type=jnp.float32)
    xw1 = z[:c1, :]      # (C1, N) = (x @ W1)^T, pre-propagation
    skip = z[c1:, :]     # (C2, N) = (x @ W_skip)^T  (skip bias folded into t2)

    # GCNConv1 propagation: (x W1)^T @ A^T == (A_norm @ (x W1))^T  (lane-dense N)
    h1 = jnp.dot(xw1.astype(jnp.bfloat16), a_t,
                 preferred_element_type=jnp.float32)

    # BatchNorm1d (eval) with conv1 bias folded in, then exact-erf GELU.
    h1 = h1 * s1_ref[...] + t1_ref[...]
    h1 = 0.5 * h1 * (1.0 + jax.lax.erf(h1 * 0.7071067811865475))

    # Dropout(p=0.3): identity in eval mode.

    # GCNConv2: transform first (C2 < C1 -> cheaper propagation), then propagate.
    hw2 = jnp.dot(w2_ref[...], h1.astype(jnp.bfloat16),
                  preferred_element_type=jnp.float32)          # (C2, N)
    h2 = jnp.dot(hw2.astype(jnp.bfloat16), a_t,
                 preferred_element_type=jnp.float32)           # (C2, N)

    # BatchNorm2 (eval) with conv2 bias + skip bias folded in, plus residual.
    out_ref[...] = (h2 * s2_ref[...] + t2_ref[...] + skip).astype(out_ref.dtype)


# ------------------------------ JAX glue -------------------------------------
def build_a_norm_t(edge_index, edge_weight, num_nodes):
    """PyG gcn_norm (add_self_loops=True), returned as dense A_norm^T so that
    (features_cm @ A_norm^T) == (A_norm @ features)^T."""
    row, col = edge_index[0], edge_index[1]
    if edge_weight is None:
        edge_weight = jnp.ones(row.shape[0], jnp.float32)
    loop = jnp.arange(num_nodes, dtype=row.dtype)
    row = jnp.concatenate([row, loop])
    col = jnp.concatenate([col, loop])
    w = jnp.concatenate([edge_weight.astype(jnp.float32),
                         jnp.ones(num_nodes, jnp.float32)])
    deg = jnp.zeros(num_nodes, jnp.float32).at[col].add(w)
    dinv = jnp.where(deg > 0.0, jax.lax.rsqrt(deg), 0.0)
    norm = dinv[row] * w * dinv[col]
    # PyG aggregation: A[col, row] = norm  ->  A^T[row, col] = norm
    return jnp.zeros((num_nodes, num_nodes), jnp.float32).at[row, col].add(norm)


def init_params(key, in_channels, channels1, channels2):
    ks = jax.random.split(key, 6)

    def glorot(k, fan_in, fan_out):
        std = (2.0 / (fan_in + fan_out)) ** 0.5
        return std * jax.random.normal(k, (fan_in, fan_out), jnp.float32)

    return {
        # GCNConv1 / GCNConv2 (stored as (in, out))
        "w1": glorot(ks[0], in_channels, channels1),
        "b1": jnp.zeros((channels1,), jnp.float32),
        "w2": glorot(ks[1], channels1, channels2),
        "b2": jnp.zeros((channels2,), jnp.float32),
        # skip_proj = nn.Linear(in_channels, channels2); stored as (in, out)
        "w_skip": glorot(ks[2], in_channels, channels2),
        "b_skip": 0.01 * jax.random.normal(ks[3], (channels2,), jnp.float32),
        # BatchNorm1d defaults (eval): gamma=1, beta=0, running_mean=0, running_var=1
        "bn1_gamma": jnp.ones((channels1,), jnp.float32),
        "bn1_beta": jnp.zeros((channels1,), jnp.float32),
        "bn1_mean": jnp.zeros((channels1,), jnp.float32),
        "bn1_var": jnp.ones((channels1,), jnp.float32),
        "bn2_gamma": jnp.ones((channels2,), jnp.float32),
        "bn2_beta": jnp.zeros((channels2,), jnp.float32),
        "bn2_mean": jnp.zeros((channels2,), jnp.float32),
        "bn2_var": jnp.ones((channels2,), jnp.float32),
    }


def prepare_encoder(params, edge_index, edge_weight, num_nodes, eps=1e-5):
    """One-time host-side prep: normalized adjacency (transposed, bf16),
    channel-major weights, and folded BN / bias scale-shift vectors."""
    a_t = build_a_norm_t(edge_index, edge_weight, num_nodes)

    s1 = params["bn1_gamma"] * jax.lax.rsqrt(params["bn1_var"] + eps)
    t1 = params["bn1_beta"] + s1 * (params["b1"] - params["bn1_mean"])
    s2 = params["bn2_gamma"] * jax.lax.rsqrt(params["bn2_var"] + eps)
    t2 = (params["bn2_beta"] + s2 * (params["b2"] - params["bn2_mean"])
          + params["b_skip"])

    w_cat = jnp.concatenate([params["w1"].T, params["w_skip"].T], axis=0)

    return {
        "a_t": a_t.astype(jnp.bfloat16),
        "w_cat": w_cat.astype(jnp.bfloat16),
        "w2": params["w2"].T.astype(jnp.bfloat16),
        "s1": s1[:, None].astype(jnp.float32),
        "t1": t1[:, None].astype(jnp.float32),
        "s2": s2[:, None].astype(jnp.float32),
        "t2": t2[:, None].astype(jnp.float32),
    }


@functools.partial(jax.jit, static_argnames=("c1",))
def image_gae_encoder(x, prep, *, c1):
    n = x.shape[0]
    c2 = prep["w2"].shape[0]
    x_cm = x.T.astype(jnp.bfloat16)          # (Cin, N), node dim on lanes

    args = (x_cm, prep["a_t"], prep["w_cat"], prep["w2"],
            prep["s1"], prep["t1"], prep["s2"], prep["t2"])
    vmem = pl.BlockSpec(memory_space=pltpu.MemorySpace.VMEM)

    out_cm = pl.pallas_call(
        functools.partial(_encoder_kernel, c1),
        out_shape=jax.ShapeDtypeStruct((c2, n), jnp.float32),
        in_specs=[vmem] * len(args),
        out_specs=vmem,
        compiler_params=pltpu.CompilerParams(vmem_limit_bytes=32 * 1024 * 1024),
    )(*args)
    return out_cm.T                          # back to node-major (N, C2)


# --------------------------- pure references ---------------------------------
def reference_f32(x, a_norm, params, eps=1e-5):
    """Full-f32 torch-equivalent math (semantic reference)."""
    s1 = params["bn1_gamma"] / jnp.sqrt(params["bn1_var"] + eps)
    t1 = params["bn1_beta"] - params["bn1_mean"] * s1
    s2 = params["bn2_gamma"] / jnp.sqrt(params["bn2_var"] + eps)
    t2 = params["bn2_beta"] - params["bn2_mean"] * s2
    skip = x @ params["w_skip"] + params["b_skip"]
    h1 = a_norm @ (x @ params["w1"]) + params["b1"]
    h1 = h1 * s1 + t1
    h1 = jax.nn.gelu(h1, approximate=False)
    h2 = a_norm @ (h1 @ params["w2"]) + params["b2"]
    h2 = h2 * s2 + t2
    return h2 + skip


def reference_mixed(x, prep, c1):
    """Plain-JAX mirror of the kernel's bf16-operand / f32-accumulate math."""
    x_cm = x.T.astype(jnp.bfloat16)
    z = jnp.dot(prep["w_cat"], x_cm, preferred_element_type=jnp.float32)
    xw1, skip = z[:c1], z[c1:]
    h1 = jnp.dot(xw1.astype(jnp.bfloat16), prep["a_t"],
                 preferred_element_type=jnp.float32)
    h1 = h1 * prep["s1"] + prep["t1"]
    h1 = jax.nn.gelu(h1, approximate=False)
    hw2 = jnp.dot(prep["w2"], h1.astype(jnp.bfloat16),
                  preferred_element_type=jnp.float32)
    h2 = jnp.dot(hw2.astype(jnp.bfloat16), prep["a_t"],
                 preferred_element_type=jnp.float32)
    return (h2 * prep["s2"] + prep["t2"] + skip).T


# ---------------------------------- main --------------------------------------
if __name__ == "__main__":
    H = W = 16          # 16x16 image -> 256 pixel-nodes
    N = H * W
    IN_CH, CH1, CH2 = 4, 32, 16

    # 4-connected grid graph over the image pixels (both directions)
    src, dst = [], []
    for r in range(H):
        for c in range(W):
            i = r * W + c
            for dr, dc in ((0, 1), (1, 0), (0, -1), (-1, 0)):
                rr, cc = r + dr, c + dc
                if 0 <= rr < H and 0 <= cc < W:
                    src.append(i)
                    dst.append(rr * W + cc)
    edge_index = jnp.array([src, dst], dtype=jnp.int32)

    key = jax.random.PRNGKey(0)
    kx, kw, kp = jax.random.split(key, 3)
    x = jax.random.normal(kx, (N, IN_CH), jnp.float32)
    edge_weight = jax.random.uniform(kw, (edge_index.shape[1],), jnp.float32,
                                     minval=0.5, maxval=1.5)
    params = init_params(kp, IN_CH, CH1, CH2)

    # One-time prep (hoisted out of the per-call path).
    prep = prepare_encoder(params, edge_index, edge_weight, N)

    out = image_gae_encoder(x, prep, c1=CH1)
    out = jax.block_until_ready(out)
    assert out.shape == (N, CH2)

    # Tight check vs. a reference that mirrors the kernel's mixed-precision math.
    ref_mx = reference_mixed(x, prep, CH1)
    assert jnp.allclose(out, ref_mx, atol=2e-3, rtol=2e-3), \
        "mismatch vs mixed-precision reference"

    # Semantic check vs. full-f32 torch-equivalent math (bf16-operand tolerance).
    a_norm = build_a_norm_t(edge_index, edge_weight, N).T
    ref_32 = reference_f32(x, a_norm, params)
    assert jnp.allclose(out, ref_32, atol=5e-2, rtol=5e-2), \
        "mismatch vs f32 reference"

    print("KERNEL_OK")
</pallas_src>

<mosaic_0001>
module attributes {stable_mosaic.version = 11 : i64} {
  func.func @_encoder_kernel(%arg0: memref<4x256xbf16, #tpu.memory_space<vmem>>, %arg1: memref<256x256xbf16, #tpu.memory_space<vmem>>, %arg2: memref<48x4xbf16, #tpu.memory_space<vmem>>, %arg3: memref<16x32xbf16, #tpu.memory_space<vmem>>, %arg4: memref<32x1xf32, #tpu.memory_space<vmem>>, %arg5: memref<32x1xf32, #tpu.memory_space<vmem>>, %arg6: memref<16x1xf32, #tpu.memory_space<vmem>>, %arg7: memref<16x1xf32, #tpu.memory_space<vmem>>, %arg8: memref<16x256xf32, #tpu.memory_space<vmem>>) attributes {dimension_semantics = [], scalar_prefetch = 0 : i64, scratch_operands = 0 : i64, tpu.core_type = #tpu.core_type<tc>} {
    %c0 = arith.constant 0 : index
    %c0_0 = arith.constant 0 : index
    %0 = vector.load %arg0[%c0, %c0_0] : memref<4x256xbf16, #tpu.memory_space<vmem>>, vector<4x256xbf16>
    %c0_1 = arith.constant 0 : index
    %c0_2 = arith.constant 0 : index
    %1 = vector.load %arg1[%c0_1, %c0_2] : memref<256x256xbf16, #tpu.memory_space<vmem>>, vector<256x256xbf16>
    %c0_3 = arith.constant 0 : index
    %c0_4 = arith.constant 0 : index
    %2 = vector.load %arg2[%c0_3, %c0_4] : memref<48x4xbf16, #tpu.memory_space<vmem>>, vector<48x4xbf16>
    %cst = arith.constant dense<0.000000e+00> : vector<48x256xf32>
    %3 = tpu.matmul %2, %0, %cst {dimension_numbers = #tpu.dot_dimension_numbers<[1], [0], [0], [1], [0, 0, 1, 1], [], []>} : vector<48x4xbf16>, vector<4x256xbf16>, vector<48x256xf32> -> vector<48x256xf32>
    %4 = vector.extract_strided_slice %3 {offsets = [0, 0], sizes = [32, 256], strides = [1, 1]} : vector<48x256xf32> to vector<32x256xf32>
    %5 = vector.extract_strided_slice %3 {offsets = [32, 0], sizes = [16, 256], strides = [1, 1]} : vector<48x256xf32> to vector<16x256xf32>
    %6 = arith.truncf %4 : vector<32x256xf32> to vector<32x256xbf16>
    %cst_5 = arith.constant dense<0.000000e+00> : vector<32x256xf32>
    %7 = tpu.matmul %6, %1, %cst_5 {dimension_numbers = #tpu.dot_dimension_numbers<[1], [0], [0], [1], [0, 0, 1, 1], [], []>} : vector<32x256xbf16>, vector<256x256xbf16>, vector<32x256xf32> -> vector<32x256xf32>
    %c0_6 = arith.constant 0 : index
    %c0_7 = arith.constant 0 : index
    %8 = vector.load %arg4[%c0_6, %c0_7] : memref<32x1xf32, #tpu.memory_space<vmem>>, vector<32x1xf32>
    %9 = vector.broadcast %8 : vector<32x1xf32> to vector<32x256xf32>
    %10 = arith.mulf %7, %9 : vector<32x256xf32>
    %c0_8 = arith.constant 0 : index
    %c0_9 = arith.constant 0 : index
    %11 = vector.load %arg5[%c0_8, %c0_9] : memref<32x1xf32, #tpu.memory_space<vmem>>, vector<32x1xf32>
    %12 = vector.broadcast %11 : vector<32x1xf32> to vector<32x256xf32>
    %13 = arith.addf %10, %12 : vector<32x256xf32>
    %cst_10 = arith.constant 5.000000e-01 : f32
    %14 = vector.broadcast %cst_10 : f32 to vector<32x256xf32>
    %15 = arith.mulf %14, %13 : vector<32x256xf32>
    %cst_11 = arith.constant 0.707106769 : f32
    %16 = vector.broadcast %cst_11 : f32 to vector<32x256xf32>
    %17 = arith.mulf %13, %16 : vector<32x256xf32>
    %18 = math.erf %17 : vector<32x256xf32>
    %cst_12 = arith.constant 1.000000e+00 : f32
    %19 = vector.broadcast %cst_12 : f32 to vector<32x256xf32>
    %20 = arith.addf %19, %18 : vector<32x256xf32>
    %21 = arith.mulf %15, %20 : vector<32x256xf32>
    %c0_13 = arith.constant 0 : index
    %c0_14 = arith.constant 0 : index
    %22 = vector.load %arg3[%c0_13, %c0_14] : memref<16x32xbf16, #tpu.memory_space<vmem>>, vector<16x32xbf16>
    %23 = arith.truncf %21 : vector<32x256xf32> to vector<32x256xbf16>
    %cst_15 = arith.constant dense<0.000000e+00> : vector<16x256xf32>
    %24 = tpu.matmul %22, %23, %cst_15 {dimension_numbers = #tpu.dot_dimension_numbers<[1], [0], [0], [1], [0, 0, 1, 1], [], []>} : vector<16x32xbf16>, vector<32x256xbf16>, vector<16x256xf32> -> vector<16x256xf32>
    %25 = arith.truncf %24 : vector<16x256xf32> to vector<16x256xbf16>
    %cst_16 = arith.constant dense<0.000000e+00> : vector<16x256xf32>
    %26 = tpu.matmul %25, %1, %cst_16 {dimension_numbers = #tpu.dot_dimension_numbers<[1], [0], [0], [1], [0, 0, 1, 1], [], []>} : vector<16x256xbf16>, vector<256x256xbf16>, vector<16x256xf32> -> vector<16x256xf32>
    %c0_17 = arith.constant 0 : index
    %c0_18 = arith.constant 0 : index
    %27 = vector.load %arg6[%c0_17, %c0_18] : memref<16x1xf32, #tpu.memory_space<vmem>>, vector<16x1xf32>
    %28 = vector.broadcast %27 : vector<16x1xf32> to vector<16x256xf32>
    %29 = arith.mulf %26, %28 : vector<16x256xf32>
    %c0_19 = arith.constant 0 : index
    %c0_20 = arith.constant 0 : index
    %30 = vector.load %arg7[%c0_19, %c0_20] : memref<16x1xf32, #tpu.memory_space<vmem>>, vector<16x1xf32>
    %31 = vector.broadcast %30 : vector<16x1xf32> to vector<16x256xf32>
    %32 = arith.addf %29, %31 : vector<16x256xf32>
    %33 = arith.addf %32, %5 : vector<16x256xf32>
    %c0_21 = arith.constant 0 : index
    %c0_22 = arith.constant 0 : index
    %34 = vector.load %arg8[%c0_21, %c0_22] : memref<16x256xf32, #tpu.memory_space<vmem>>, vector<16x256xf32>
    tpu.vector_store %arg8[%c0_21, %c0_22], %33 {strides = array<i32>} : memref<16x256xf32, #tpu.memory_space<vmem>>, vector<16x256xf32>,
    return
  }
}

</mosaic_0001>

<llo_original>
// kernel: image_gae_encoder.1
$region0: #{image_gae_encoder.1}
  #allocation0 [shape = 'u32[]', space=smem, size = 0x4, offset = 0x4, fixed_abs, tag = 'smem constant byte address 0x4 - core index']
  #allocation1 [shape = 'u32[72,128]{1,0:T(1,128)}', space=vmem, size = 0x9000, scoped, tag = 'internal scratch']
  %s0 = inlined_call_operand.vmem [shape: bf16[4,256], index: 0, kind: input, shape index: {}]
  %s1 = inlined_call_operand.hbm [shape: bf16[256,256], index: 1, kind: input, shape index: {}]
  %s2 = inlined_call_operand.vmem [shape: bf16[48,4], index: 2, kind: input, shape index: {}]
  %s3 = inlined_call_operand.vmem [shape: bf16[16,32], index: 3, kind: input, shape index: {}]
  %s4 = inlined_call_operand.vmem [shape: f32[32,1], index: 4, kind: input, shape index: {}]
  %s5 = inlined_call_operand.vmem [shape: f32[32,1], index: 5, kind: input, shape index: {}]
  %s6 = inlined_call_operand.vmem [shape: f32[16,1], index: 6, kind: input, shape index: {}]
  %s7 = inlined_call_operand.vmem [shape: f32[16,1], index: 7, kind: input, shape index: {}]
  %s8 = inlined_call_operand.hbm [shape: f32[16,256], index: 8, kind: output, shape index: {}]
  %s9 = sld [smem:[#allocation0]]
  $region46: #{image_gae_encoder.1} parent=0
    _
  %s11 = ssub.s32 1, %s9
  %s12 = scalar_select 0, %s11, %s9
  $region1: #{image_gae_encoder.1} parent=0
    #allocation2 [shape = 'u8[131072]{0}', space=vmem, size = 0x20000, scoped, tag = 'input window, operand 1, single buffered']
    #allocation3 [shape = 's32[1]{0}', space=sflag, size = 0x4, scoped, tag = 'scoped memory for image_gae_encoder.1']
    #allocation4 [shape = 's32[1]{0}', space=sflag, size = 0x4, scoped, tag = 'scoped memory for image_gae_encoder.1']
    #allocation5 [shape = 'u8[16384]{0}', space=vmem, size = 0x4000, scoped, tag = 'output window, operand 0, single buffered']
    %13 = vsyncpa [#allocation3], 0
    %14 = vsyncpa [#allocation4], 0
    // Predicated region
    $region2: #{image_gae_encoder.1} parent=1 // pred_check
      _
    $region3: #{image_gae_encoder.1} parent=1 // pred_check_branch
      %16 = sbr.rel (0) target = $region5
    $region4: #{image_gae_encoder.1} parent=1 // pred_region
      _
    $region5: #{image_gae_encoder.1} parent=1 // pred_fallthru
      _
    // Predicated region
    $region6: #{image_gae_encoder.1} parent=1 // pred_check
      _
    $region7: #{image_gae_encoder.1} parent=1 // pred_check_branch
      %18 = sbr.rel (0) target = $region9
    $region8: #{image_gae_encoder.1} parent=1 // pred_region
      %20 = vsyncadd [#allocation3], 0
      %s21 = sshll.u32 %s1, 4
      %s22 = int_to_ptr.hbm [resolvable:$true] %s21
      %s23 = sshll.u32 [#allocation2], 4
      %s24 = int_to_ptr.vmem [resolvable:$true] %s23
      %29 = dma.hbm_to_vmem [thread:$0]  %s22, 4096, %s24, [#allocation3], 128, 128, 8
    $region9: #{image_gae_encoder.1} parent=1 // pred_fallthru
      _
    // Predicated region
    $region10: #{image_gae_encoder.1} parent=1 // pred_check
      _
    $region11: #{image_gae_encoder.1} parent=1 // pred_check_branch
      %31 = sbr.rel (0) target = $region13
    $region12: #{image_gae_encoder.1} parent=1 // pred_region
      _
    $region13: #{image_gae_encoder.1} parent=1 // pred_fallthru
      _
    // Predicated region
    $region14: #{image_gae_encoder.1} parent=1 // pred_check
      _
    $region15: #{image_gae_encoder.1} parent=1 // pred_check_branch
      %33 = sbr.rel (0) target = $region17
    $region16: #{image_gae_encoder.1} parent=1 // pred_region
      _
    $region17: #{image_gae_encoder.1} parent=1 // pred_fallthru
      _
    // Predicated region
    $region18: #{image_gae_encoder.1} parent=1 // pred_check
      _
    $region19: #{image_gae_encoder.1} parent=1 // pred_check_branch
      %35 = sbr.rel (0) target = $region21
    $region20: #{image_gae_encoder.1} parent=1 // pred_region
      _
    $region21: #{image_gae_encoder.1} parent=1 // pred_fallthru
      _
    // Predicated region
    $region22: #{image_gae_encoder.1} parent=1 // pred_check
      _
    $region23: #{image_gae_encoder.1} parent=1 // pred_check_branch
      %37 = sbr.rel (0) target = $region25
    $region24: #{image_gae_encoder.1} parent=1 // pred_region
      _
    $region25: #{image_gae_encoder.1} parent=1 // pred_fallthru
      _
    // Predicated region
    $region26: #{image_gae_encoder.1} parent=1 // pred_check
      _
    $region27: #{image_gae_encoder.1} parent=1 // pred_check_branch
      %39 = sbr.rel (0) target = $region29
    $region28: #{image_gae_encoder.1} parent=1 // pred_region
      _
    $region29: #{image_gae_encoder.1} parent=1 // pred_fallthru
      _
    // Predicated region
    $region30: #{image_gae_encoder.1} parent=1 // pred_check
      _
    $region31: #{image_gae_encoder.1} parent=1 // pred_check_branch
      %41 = sbr.rel (0) target = $region33
    $region32: #{image_gae_encoder.1} parent=1 // pred_region
      _
    $region33: #{image_gae_encoder.1} parent=1 // pred_fallthru
      _
    // Predicated region
    $region34: #{image_gae_encoder.1} parent=1 // pred_check
      _
    $region35: #{image_gae_encoder.1} parent=1 // pred_check_branch
      %43 = sbr.rel (0) target = $region37
    $region36: #{image_gae_encoder.1} parent=1 // pred_region
      %45 = dma.done [#allocation3], 4096
    $region37: #{image_gae_encoder.1} parent=1 // pred_fallthru
      _
    %v47 = vld [vmem:[%s0] sm:$0xf]
    %v48 = vld [vmem:[#allocation2] sm:$0xff]
    %v49 = vld [vmem:[#allocation2 + $0x8] sm:$0xff]
    %v50 = vld [vmem:[#allocation2 + $0x10] sm:$0xff]
    %v51 = vld [vmem:[#allocation2 + $0x18] sm:$0xff]
    %v52 = vld [vmem:[#allocation2 + $0x20] sm:$0xff]
    %v53 = vld [vmem:[#allocation2 + $0x28] sm:$0xff]
    %v54 = vld [vmem:[#allocation2 + $0x30] sm:$0xff]
    %v55 = vld [vmem:[#allocation2 + $0x38] sm:$0xff]
    %v56 = vld [vmem:[#allocation2 + $0x40] sm:$0xff]
    %v57 = vld [vmem:[#allocation2 + $0x48] sm:$0xff]
    %v58 = vld [vmem:[#allocation2 + $0x50] sm:$0xff]
    %v59 = vld [vmem:[#allocation2 + $0x58] sm:$0xff]
    %v60 = vld [vmem:[#allocation2 + $0x60] sm:$0xff]
    %v61 = vld [vmem:[#allocation2 + $0x68] sm:$0xff]
    %v62 = vld [vmem:[#allocation2 + $0x70] sm:$0xff]
    %v63 = vld [vmem:[#allocation2 + $0x78] sm:$0xff]
    %v64 = vld [vmem:[#allocation2 + $0x80] sm:$0xff]
    %v65 = vld [vmem:[#allocation2 + $0x88] sm:$0xff]
    %v66 = vld [vmem:[#allocation2 + $0x90] sm:$0xff]
    %v67 = vld [vmem:[#allocation2 + $0x98] sm:$0xff]
    %v68 = vld [vmem:[#allocation2 + $0xa0] sm:$0xff]
    %v69 = vld [vmem:[#allocation2 + $0xa8] sm:$0xff]
    %v70 = vld [vmem:[#allocation2 + $0xb0] sm:$0xff]
    %v71 = vld [vmem:[#allocation2 + $0xb8] sm:$0xff]
    %v72 = vld [vmem:[#allocation2 + $0xc0] sm:$0xff]
    %v73 = vld [vmem:[#allocation2 + $0xc8] sm:$0xff]
    %v74 = vld [vmem:[#allocation2 + $0xd0] sm:$0xff]
    %v75 = vld [vmem:[#allocation2 + $0xd8] sm:$0xff]
    %v76 = vld [vmem:[#allocation2 + $0xe0] sm:$0xff]
    %v77 = vld [vmem:[#allocation2 + $0xe8] sm:$0xff]
    %v78 = vld [vmem:[#allocation2 + $0xf0] sm:$0xff]
    %v79 = vld [vmem:[#allocation2 + $0xf8] sm:$0xff]
    %v80 = vld [vmem:[%s2] sm:$0xf]
    %v81 = vld [vmem:[%s2 + $0x4] sm:$0xf]
    %v82 = vld [vmem:[%s2 + $0x8] sm:$0xf]
    %v83 = vld [vmem:[%s2 + $0xc] sm:$0xf]
    %v84 = vld [vmem:[%s2 + $0x10] sm:$0xf]
    %v85 = vld [vmem:[%s2 + $0x14] sm:$0xf]
    %v92 = vunpack.c.l.b16 %v80
    %v93 = vunpack.c.l.b16 %v81
    %v94 = vunpack.c.l.b16 %v82
    %v95 = vunpack.c.l.b16 %v83
    %v96 = vunpack.c.l.b16 %v84
    %v97 = vunpack.c.l.b16 %v85
    %v98 = vpack.c.b16 %v93, %v92
    %v99 = vpack.c.b16 %v95, %v94
    %v100 = vpack.c.b16 %v97, %v96
    %102 = vst [vmem:[#allocation1] ss:$4 sm:$0xff] %v47
    %v103 = vld.sshfl [vmem:[#allocation1] sm:$0xff pattern:$0x73625140]
    %v104 = vld.sshfl [vmem:[#allocation1 + $0x8] sm:$0xff pattern:$0x73625140]
    %vm105 = vcmask 31744
    %v107 = vsel %vm105, %v98, 0
    %v110 = vsel %vm105, %v99, 0
    %v113 = vsel %vm105, %v100, 0
    %vm115 = vcmask 1041408
    %v116 = vsel %vm115, %v103, 0
    %v118 = vsel %vm115, %v104, 0
    %120 = vmatpush.bf16.msra.mxu0 0
    %121 = vmatpush.bf16.msra.mxu0 0
    %122 = vmatpush.bf16.msra.mxu0 0
    %123 = vmatpush.bf16.msra.mxu0 0
    %124 = vmatpush.bf16.msra.mxu0 0
    %125 = vmatpush.bf16.msra.mxu0 0
    %126 = vmatpush.bf16.msra.mxu0 0
    %127 = vmatpush.bf16.msra.mxu0 %v116
    %128 = vmatmul.bf16.gmra.mxu0 %v107
    %v129 = vpop.f32.mrf.mxu0
    %v130 = vadd.f32 0.0, %v129
    %v131 = vpop.f32.mrf.mxu0
    %v132 = vadd.f32 0.0, %v131
    %133 = vmatmul.bf16.gmra.mxu0 %v110
    %v134 = vpop.f32.mrf.mxu0
    %v135 = vadd.f32 0.0, %v134
    %v136 = vpop.f32.mrf.mxu0
    %v137 = vadd.f32 0.0, %v136
    %138 = vmatmul.bf16.gmra.mxu0 %v113
    %v139 = vpop.f32.mrf.mxu0
    %v140 = vadd.f32 0.0, %v139
    %v141 = vpop.f32.mrf.mxu0
    %v142 = vadd.f32 0.0, %v141
    %143 = vdwg.mxu0
    %144 = vmatpush.bf16.msra.mxu0 0
    %145 = vmatpush.bf16.msra.mxu0 0
    %146 = vmatpush.bf16.msra.mxu0 0
    %147 = vmatpush.bf16.msra.mxu0 0
    %148 = vmatpush.bf16.msra.mxu0 0
    %149 = vmatpush.bf16.msra.mxu0 0
    %150 = vmatpush.bf16.msra.mxu0 0
    %151 = vmatpush.bf16.msra.mxu0 %v118
    %152 = vmatmul.bf16.gmra.mxu0 %v107
    %v153 = vpop.f32.mrf.mxu0
    %v154 = vadd.f32 0.0, %v153
    %v155 = vpop.f32.mrf.mxu0
    %v156 = vadd.f32 0.0, %v155
    %157 = vmatmul.bf16.gmra.mxu0 %v110
    %v158 = vpop.f32.mrf.mxu0
    %v159 = vadd.f32 0.0, %v158
    %v160 = vpop.f32.mrf.mxu0
    %v161 = vadd.f32 0.0, %v160
    %162 = vmatmul.bf16.gmra.mxu0 %v113
    %v163 = vpop.f32.mrf.mxu0
    %v164 = vadd.f32 0.0, %v163
    %v165 = vpop.f32.mrf.mxu0
    %v166 = vadd.f32 0.0, %v165
    %167 = vdwg.mxu0
    %v168 = vpack.c.bf16 %v132, %v130
    %v169 = vpack.c.bf16 %v156, %v154
    %v170 = vpack.c.bf16 %v137, %v135
    %v171 = vpack.c.bf16 %v161, %v159
    %v204 = vunpack.c.l.b16 %v48
    %v205 = vunpack.c.h.b16 %v48
    %v206 = vunpack.c.l.b16 %v49
    %v207 = vunpack.c.h.b16 %v49
    %v208 = vunpack.c.l.b16 %v50
    %v209 = vunpack.c.h.b16 %v50
    %v210 = vunpack.c.l.b16 %v51
    %v211 = vunpack.c.h.b16 %v51
    %v212 = vunpack.c.l.b16 %v52
    %v213 = vunpack.c.h.b16 %v52
    %v214 = vunpack.c.l.b16 %v53
    %v215 = vunpack.c.h.b16 %v53
    %v216 = vunpack.c.l.b16 %v54
    %v217 = vunpack.c.h.b16 %v54
    %v218 = vunpack.c.l.b16 %v55
    %v219 = vunpack.c.h.b16 %v55
    %v220 = vunpack.c.l.b16 %v56
    %v221 = vunpack.c.h.b16 %v56
    %v222 = vunpack.c.l.b16 %v57
    %v223 = vunpack.c.h.b16 %v57
    %v224 = vunpack.c.l.b16 %v58
    %v225 = vunpack.c.h.b16 %v58
    %v226 = vunpack.c.l.b16 %v59
    %v227 = vunpack.c.h.b16 %v59
    %v228 = vunpack.c.l.b16 %v60
    %v229 = vunpack.c.h.b16 %v60
    %v230 = vunpack.c.l.b16 %v61
    %v231 = vunpack.c.h.b16 %v61
    %v232 = vunpack.c.l.b16 %v62
    %v233 = vunpack.c.h.b16 %v62
    %v234 = vunpack.c.l.b16 %v63
    %v235 = vunpack.c.h.b16 %v63
    %v236 = vunpack.c.l.b16 %v64
    %v237 = vunpack.c.h.b16 %v64
    %v238 = vunpack.c.l.b16 %v65
    %v239 = vunpack.c.h.b16 %v65
    %v240 = vunpack.c.l.b16 %v66
    %v241 = vunpack.c.h.b16 %v66
    %v242 = vunpack.c.l.b16 %v67
    %v243 = vunpack.c.h.b16 %v67
    %v244 = vunpack.c.l.b16 %v68
    %v245 = vunpack.c.h.b16 %v68
    %v246 = vunpack.c.l.b16 %v69
    %v247 = vunpack.c.h.b16 %v69
    %v248 = vunpack.c.l.b16 %v70
    %v249 = vunpack.c.h.b16 %v70
    %v250 = vunpack.c.l.b16 %v71
    %v251 = vunpack.c.h.b16 %v71
    %v252 = vunpack.c.l.b16 %v72
    %v253 = vunpack.c.h.b16 %v72
    %v254 = vunpack.c.l.b16 %v73
    %v255 = vunpack.c.h.b16 %v73
    %v256 = vunpack.c.l.b16 %v74
    %v257 = vunpack.c.h.b16 %v74
    %v258 = vunpack.c.l.b16 %v75
    %v259 = vunpack.c.h.b16 %v75
    %v260 = vunpack.c.l.b16 %v76
    %v261 = vunpack.c.h.b16 %v76
    %v262 = vunpack.c.l.b16 %v77
    %v263 = vunpack.c.h.b16 %v77
    %v264 = vunpack.c.l.b16 %v78
    %v265 = vunpack.c.h.b16 %v78
    %v266 = vunpack.c.l.b16 %v79
    %v267 = vunpack.c.h.b16 %v79
    %v268 = vpack.c.b16 %v206, %v204
    %v269 = vpack.c.b16 %v207, %v205
    %v270 = vpack.c.b16 %v210, %v208
    %v271 = vpack.c.b16 %v211, %v209
    %v272 = vpack.c.b16 %v214, %v212
    %v273 = vpack.c.b16 %v215, %v213
    %v274 = vpack.c.b16 %v218, %v216
    %v275 = vpack.c.b16 %v219, %v217
    %v276 = vpack.c.b16 %v222, %v220
    %v277 = vpack.c.b16 %v223, %v221
    %v278 = vpack.c.b16 %v226, %v224
    %v279 = vpack.c.b16 %v227, %v225
    %v280 = vpack.c.b16 %v230, %v228
    %v281 = vpack.c.b16 %v231, %v229
    %v282 = vpack.c.b16 %v234, %v232
    %v283 = vpack.c.b16 %v235, %v233
    %v284 = vpack.c.b16 %v238, %v236
    %v285 = vpack.c.b16 %v239, %v237
    %v286 = vpack.c.b16 %v242, %v240
    %v287 = vpack.c.b16 %v243, %v241
    %v288 = vpack.c.b16 %v246, %v244
    %v289 = vpack.c.b16 %v247, %v245
    %v290 = vpack.c.b16 %v250, %v248
    %v291 = vpack.c.b16 %v251, %v249
    %v292 = vpack.c.b16 %v254, %v252
    %v293 = vpack.c.b16 %v255, %v253
    %v294 = vpack.c.b16 %v258, %v256
    %v295 = vpack.c.b16 %v259, %v257
    %v296 = vpack.c.b16 %v262, %v260
    %v297 = vpack.c.b16 %v263, %v261
    %v298 = vpack.c.b16 %v266, %v264
    %v299 = vpack.c.b16 %v267, %v265
    %332 = vmatpush.bf16.msra.mxu0 %v282
    %333 = vmatpush.bf16.msra.mxu0 %v280
    %334 = vmatpush.bf16.msra.mxu0 %v278
    %335 = vmatpush.bf16.msra.mxu0 %v276
    %336 = vmatpush.bf16.msra.mxu0 %v274
    %337 = vmatpush.bf16.msra.mxu0 %v272
    %338 = vmatpush.bf16.msra.mxu0 %v270
    %339 = vmatpush.bf16.msra.mxu0 %v268
    %340 = vmatmul.bf16.gmra.mxu0 %v168
    %v341 = vpop.f32.mrf.mxu0
    %v342 = vadd.f32 0.0, %v341
    %v343 = vpop.f32.mrf.mxu0
    %v344 = vadd.f32 0.0, %v343
    %345 = vmatmul.bf16.gmra.mxu0 %v170
    %v346 = vpop.f32.mrf.mxu0
    %v347 = vadd.f32 0.0, %v346
    %v348 = vpop.f32.mrf.mxu0
    %v349 = vadd.f32 0.0, %v348
    %350 = vdwg.mxu0
    %351 = vmatpush.bf16.msra.mxu0 %v298
    %352 = vmatpush.bf16.msra.mxu0 %v296
    %353 = vmatpush.bf16.msra.mxu0 %v294
    %354 = vmatpush.bf16.msra.mxu0 %v292
    %355 = vmatpush.bf16.msra.mxu0 %v290
    %356 = vmatpush.bf16.msra.mxu0 %v288
    %357 = vmatpush.bf16.msra.mxu0 %v286
    %358 = vmatpush.bf16.msra.mxu0 %v284
    %359 = vmatmul.bf16.gmra.mxu0 %v169
    %v360 = vpop.f32.mrf.mxu0
    %v361 = vadd.f32 %v342, %v360
    %v362 = vpop.f32.mrf.mxu0
    %v363 = vadd.f32 %v344, %v362
    %364 = vmatmul.bf16.gmra.mxu0 %v171
    %v365 = vpop.f32.mrf.mxu0
    %v366 = vadd.f32 %v347, %v365
    %v367 = vpop.f32.mrf.mxu0
    %v368 = vadd.f32 %v349, %v367
    %369 = vdwg.mxu0
    %370 = vmatpush.bf16.msra.mxu0 %v283
    %371 = vmatpush.bf16.msra.mxu0 %v281
    %372 = vmatpush.bf16.msra.mxu0 %v279
    %373 = vmatpush.bf16.msra.mxu0 %v277
    %374 = vmatpush.bf16.msra.mxu0 %v275
    %375 = vmatpush.bf16.msra.mxu0 %v273
    %376 = vmatpush.bf16.msra.mxu0 %v271
    %377 = vmatpush.bf16.msra.mxu0 %v269
    %378 = vmatmul.bf16.gmra.mxu0 %v168
    %v379 = vpop.f32.mrf.mxu0
    %v380 = vadd.f32 0.0, %v379
    %v381 = vpop.f32.mrf.mxu0
    %v382 = vadd.f32 0.0, %v381
    %383 = vmatmul.bf16.gmra.mxu0 %v170
    %v384 = vpop.f32.mrf.mxu0
    %v385 = vadd.f32 0.0, %v384
    %v386 = vpop.f32.mrf.mxu0
    %v387 = vadd.f32 0.0, %v386
    %388 = vdwg.mxu0
    %389 = vmatpush.bf16.msra.mxu0 %v299
    %390 = vmatpush.bf16.msra.mxu0 %v297
    %391 = vmatpush.bf16.msra.mxu0 %v295
    %392 = vmatpush.bf16.msra.mxu0 %v293
    %393 = vmatpush.bf16.msra.mxu0 %v291
    %394 = vmatpush.bf16.msra.mxu0 %v289
    %395 = vmatpush.bf16.msra.mxu0 %v287
    %396 = vmatpush.bf16.msra.mxu0 %v285
    %397 = vmatmul.bf16.gmra.mxu0 %v169
    %v398 = vpop.f32.mrf.mxu0
    %v399 = vadd.f32 %v380, %v398
    %v400 = vpop.f32.mrf.mxu0
    %v401 = vadd.f32 %v382, %v400
    %402 = vmatmul.bf16.gmra.mxu0 %v171
    %v403 = vpop.f32.mrf.mxu0
    %v404 = vadd.f32 %v385, %v403
    %v405 = vpop.f32.mrf.mxu0
    %v406 = vadd.f32 %v387, %v405
    %407 = vdwg.mxu0
    %v408 = vld [vmem:[%s4] sm:$0xff]
    %v409 = vld [vmem:[%s4 + $0x8] sm:$0xff]
    %v410 = vld [vmem:[%s4 + $0x10] sm:$0xff]
    %v411 = vld [vmem:[%s4 + $0x18] sm:$0xff]
    %413 = vset.pattern.permute.xlu0 0
    %414 = vperm.xlu0 %413, %v408
    %v415 = vpop.permute.xlu0 %414
    %418 = vset.pattern.permute.xlu0 0
    %419 = vperm.xlu0 %418, %v409
    %v420 = vpop.permute.xlu0 %419
    %423 = vset.pattern.permute.xlu0 0
    %424 = vperm.xlu0 %423, %v410
    %v425 = vpop.permute.xlu0 %424
    %428 = vset.pattern.permute.xlu0 0
    %429 = vperm.xlu0 %428, %v411
    %v430 = vpop.permute.xlu0 %429
    %v432 = vmul.f32 %v361, %v415
    %v433 = vmul.f32 %v399, %v415
    %v434 = vmul.f32 %v363, %v420
    %v435 = vmul.f32 %v401, %v420
    %v436 = vmul.f32 %v366, %v425
    %v437 = vmul.f32 %v404, %v425
    %v438 = vmul.f32 %v368, %v430
    %v439 = vmul.f32 %v406, %v430
    %v440 = vld [vmem:[%s5] sm:$0xff]
    %v441 = vld [vmem:[%s5 + $0x8] sm:$0xff]
    %v442 = vld [vmem:[%s5 + $0x10] sm:$0xff]
    %v443 = vld [vmem:[%s5 + $0x18] sm:$0xff]
    %445 = vset.pattern.permute.xlu0 0
    %446 = vperm.xlu0 %445, %v440
    %v447 = vpop.permute.xlu0 %446
    %450 = vset.pattern.permute.xlu0 0
    %451 = vperm.xlu0 %450, %v441
    %v452 = vpop.permute.xlu0 %451
    %455 = vset.pattern.permute.xlu0 0
    %456 = vperm.xlu0 %455, %v442
    %v457 = vpop.permute.xlu0 %456
    %460 = vset.pattern.permute.xlu0 0
    %461 = vperm.xlu0 %460, %v443
    %v462 = vpop.permute.xlu0 %461
    %v464 = vadd.f32 %v432, %v447
    %v465 = vadd.f32 %v433, %v447
    %v466 = vadd.f32 %v434, %v452
    %v467 = vadd.f32 %v435, %v452
    %v468 = vadd.f32 %v436, %v457
    %v469 = vadd.f32 %v437, %v457
    %v470 = vadd.f32 %v438, %v462
    %v471 = vadd.f32 %v439, %v462
    %v472 = vmul.f32 %v464, 0.5
    %v473 = vmul.f32 %v465, 0.5
    %v474 = vmul.f32 %v466, 0.5
    %v475 = vmul.f32 %v467, 0.5
    %v476 = vmul.f32 %v468, 0.5
    %v477 = vmul.f32 %v469, 0.5
    %v478 = vmul.f32 %v470, 0.5
    %v479 = vmul.f32 %v471, 0.5
    %v480 = vmul.f32 %v464, 0.70710677
    %v481 = vmul.f32 %v465, 0.70710677
    %v482 = vmul.f32 %v466, 0.70710677
    %v483 = vmul.f32 %v467, 0.70710677
    %v484 = vmul.f32 %v468, 0.70710677
    %v485 = vmul.f32 %v469, 0.70710677
    %v486 = vmul.f32 %v470, 0.70710677
    %v487 = vmul.f32 %v471, 0.70710677
    %v488 = vmul.f32 %v480, %v480
    %v489 = vmin.f32 16.0, %v488
    %v490 = vmul.f32 %v489, 2.1237322e-06
    %v491 = vadd.f32 %v490, 0.00028619796
    %v492 = vmul.f32 %v489, %v491
    %v493 = vadd.f32 %v492, 0.0036580483
    %v494 = vmul.f32 %v489, %v493
    %v495 = vadd.f32 %v494, 0.05243302
    %v496 = vmul.f32 %v489, %v495
    %v497 = vadd.f32 %v496, 0.18741608
    %v498 = vmul.f32 %v489, %v497
    %v499 = vadd.f32 %v498, 1.1283791
    %v500 = vmul.f32 %v480, %v499
    %v501 = vmul.f32 %v489, 3.8918573e-05
    %v502 = vadd.f32 %v501, 0.001143296
    %v503 = vmul.f32 %v489, %v502
    %v504 = vadd.f32 %v503, 0.014752088
    %v505 = vmul.f32 %v489, %v504
    %v506 = vadd.f32 %v505, 0.112945676
    %v507 = vmul.f32 %v489, %v506
    %v508 = vadd.f32 %v507, 0.4994258
    %v509 = vmul.f32 %v489, %v508
    %v510 = vadd.f32 %v509, 1.0
    %v511 = vrcp.pop %v510
    %v512 = vmul.f32 %v510, %v511
    %v513 = vsub.f32 1.0, %v512
    %v514 = vmul.f32 %v511, %v513
    %v515 = vadd.f32 %v511, %v514
    %vm516 = vweird.f32 %v510
    %vm517 = vweird.f32 %v511
    %vm518 = vmor %vm516, %vm517
    %v519 = vsel %vm518, %v511, %v515
    %v520 = vand.u32 2147483647, %v510
    %vm521 = vcmp.eq.f32.partialorder %v520, 8.507059e+37
    %v522 = vand.u32 %v510, 2147483648
    %v523 = vor.u32 1.1754944e-38, %v522
    %v524 = vsel %vm521, %v523, %v519
    %v525 = vmul.f32 %v500, %v524
    %v526 = vmin.f32 %v525, 1.0
    %v527 = vmax.f32 %v526, -1.0
    %v528 = vmul.f32 %v481, %v481
    %v529 = vmin.f32 16.0, %v528
    %v530 = vmul.f32 %v529, 2.1237322e-06
    %v531 = vadd.f32 %v530, 0.00028619796
    %v532 = vmul.f32 %v529, %v531
    %v533 = vadd.f32 %v532, 0.0036580483
    %v534 = vmul.f32 %v529, %v533
    %v535 = vadd.f32 %v534, 0.05243302
    %v536 = vmul.f32 %v529, %v535
    %v537 = vadd.f32 %v536, 0.18741608
    %v538 = vmul.f32 %v529, %v537
    %v539 = vadd.f32 %v538, 1.1283791
    %v540 = vmul.f32 %v481, %v539
    %v541 = vmul.f32 %v529, 3.8918573e-05
    %v542 = vadd.f32 %v541, 0.001143296
    %v543 = vmul.f32 %v529, %v542
    %v544 = vadd.f32 %v543, 0.014752088
    %v545 = vmul.f32 %v529, %v544
    %v546 = vadd.f32 %v545, 0.112945676
    %v547 = vmul.f32 %v529, %v546
    %v548 = vadd.f32 %v547, 0.4994258
    %v549 = vmul.f32 %v529, %v548
    %v550 = vadd.f32 %v549, 1.0
    %v551 = vrcp.pop %v550
    %v552 = vmul.f32 %v550, %v551
    %v553 = vsub.f32 1.0, %v552
    %v554 = vmul.f32 %v551, %v553
    %v555 = vadd.f32 %v551, %v554
    %vm556 = vweird.f32 %v550
    %vm557 = vweird.f32 %v551
    %vm558 = vmor %vm556, %vm557
    %v559 = vsel %vm558, %v551, %v555
    %v560 = vand.u32 2147483647, %v550
    %vm561 = vcmp.eq.f32.partialorder %v560, 8.507059e+37
    %v562 = vand.u32 %v550, 2147483648
    %v563 = vor.u32 1.1754944e-38, %v562
    %v564 = vsel %vm561, %v563, %v559
    %v565 = vmul.f32 %v540, %v564
    %v566 = vmin.f32 %v565, 1.0
    %v567 = vmax.f32 %v566, -1.0
    %v568 = vmul.f32 %v482, %v482
    %v569 = vmin.f32 16.0, %v568
    %v570 = vmul.f32 %v569, 2.1237322e-06
    %v571 = vadd.f32 %v570, 0.00028619796
    %v572 = vmul.f32 %v569, %v571
    %v573 = vadd.f32 %v572, 0.0036580483
    %v574 = vmul.f32 %v569, %v573
    %v575 = vadd.f32 %v574, 0.05243302
    %v576 = vmul.f32 %v569, %v575
    %v577 = vadd.f32 %v576, 0.18741608
    %v578 = vmul.f32 %v569, %v577
    %v579 = vadd.f32 %v578, 1.1283791
    %v580 = vmul.f32 %v482, %v579
    %v581 = vmul.f32 %v569, 3.8918573e-05
    %v582 = vadd.f32 %v581, 0.001143296
    %v583 = vmul.f32 %v569, %v582
    %v584 = vadd.f32 %v583, 0.014752088
    %v585 = vmul.f32 %v569, %v584
    %v586 = vadd.f32 %v585, 0.112945676
    %v587 = vmul.f32 %v569, %v586
    %v588 = vadd.f32 %v587, 0.4994258
    %v589 = vmul.f32 %v569, %v588
    %v590 = vadd.f32 %v589, 1.0
    %v591 = vrcp.pop %v590
    %v592 = vmul.f32 %v590, %v591
    %v593 = vsub.f32 1.0, %v592
    %v594 = vmul.f32 %v591, %v593
    %v595 = vadd.f32 %v591, %v594
    %vm596 = vweird.f32 %v590
    %vm597 = vweird.f32 %v591
    %vm598 = vmor %vm596, %vm597
    %v599 = vsel %vm598, %v591, %v595
    %v600 = vand.u32 2147483647, %v590
    %vm601 = vcmp.eq.f32.partialorder %v600, 8.507059e+37
    %v602 = vand.u32 %v590, 2147483648
    %v603 = vor.u32 1.1754944e-38, %v602
    %v604 = vsel %vm601, %v603, %v599
    %v605 = vmul.f32 %v580, %v604
    %v606 = vmin.f32 %v605, 1.0
    %v607 = vmax.f32 %v606, -1.0
    %v608 = vmul.f32 %v483, %v483
    %v609 = vmin.f32 16.0, %v608
    %v610 = vmul.f32 %v609, 2.1237322e-06
    %v611 = vadd.f32 %v610, 0.00028619796
    %v612 = vmul.f32 %v609, %v611
    %v613 = vadd.f32 %v612, 0.0036580483
    %v614 = vmul.f32 %v609, %v613
    %v615 = vadd.f32 %v614, 0.05243302
    %v616 = vmul.f32 %v609, %v615
    %v617 = vadd.f32 %v616, 0.18741608
    %v618 = vmul.f32 %v609, %v617
    %v619 = vadd.f32 %v618, 1.1283791
    %v620 = vmul.f32 %v483, %v619
    %v621 = vmul.f32 %v609, 3.8918573e-05
    %v622 = vadd.f32 %v621, 0.001143296
    %v623 = vmul.f32 %v609, %v622
    %v624 = vadd.f32 %v623, 0.014752088
    %v625 = vmul.f32 %v609, %v624
    %v626 = vadd.f32 %v625, 0.112945676
    %v627 = vmul.f32 %v609, %v626
    %v628 = vadd.f32 %v627, 0.4994258
    %v629 = vmul.f32 %v609, %v628
    %v630 = vadd.f32 %v629, 1.0
    %v631 = vrcp.pop %v630
    %v632 = vmul.f32 %v630, %v631
    %v633 = vsub.f32 1.0, %v632
    %v634 = vmul.f32 %v631, %v633
    %v635 = vadd.f32 %v631, %v634
    %vm636 = vweird.f32 %v630
    %vm637 = vweird.f32 %v631
    %vm638 = vmor %vm636, %vm637
    %v639 = vsel %vm638, %v631, %v635
    %v640 = vand.u32 2147483647, %v630
    %vm641 = vcmp.eq.f32.partialorder %v640, 8.507059e+37
    %v642 = vand.u32 %v630, 2147483648
    %v643 = vor.u32 1.1754944e-38, %v642
    %v644 = vsel %vm641, %v643, %v639
    %v645 = vmul.f32 %v620, %v644
    %v646 = vmin.f32 %v645, 1.0
    %v647 = vmax.f32 %v646, -1.0
    %v648 = vmul.f32 %v484, %v484
    %v649 = vmin.f32 16.0, %v648
    %v650 = vmul.f32 %v649, 2.1237322e-06
    %v651 = vadd.f32 %v650, 0.00028619796
    %v652 = vmul.f32 %v649, %v651
    %v653 = vadd.f32 %v652, 0.0036580483
    %v654 = vmul.f32 %v649, %v653
    %v655 = vadd.f32 %v654, 0.05243302
    %v656 = vmul.f32 %v649, %v655
    %v657 = vadd.f32 %v656, 0.18741608
    %v658 = vmul.f32 %v649, %v657
    %v659 = vadd.f32 %v658, 1.1283791
    %v660 = vmul.f32 %v484, %v659
    %v661 = vmul.f32 %v649, 3.8918573e-05
    %v662 = vadd.f32 %v661, 0.001143296
    %v663 = vmul.f32 %v649, %v662
    %v664 = vadd.f32 %v663, 0.014752088
    %v665 = vmul.f32 %v649, %v664
    %v666 = vadd.f32 %v665, 0.112945676
    %v667 = vmul.f32 %v649, %v666
    %v668 = vadd.f32 %v667, 0.4994258
    %v669 = vmul.f32 %v649, %v668
    %v670 = vadd.f32 %v669, 1.0
    %v671 = vrcp.pop %v670
    %v672 = vmul.f32 %v670, %v671
    %v673 = vsub.f32 1.0, %v672
    %v674 = vmul.f32 %v671, %v673
    %v675 = vadd.f32 %v671, %v674
    %vm676 = vweird.f32 %v670
    %vm677 = vweird.f32 %v671
    %vm678 = vmor %vm676, %vm677
    %v679 = vsel %vm678, %v671, %v675
    %v680 = vand.u32 2147483647, %v670
    %vm681 = vcmp.eq.f32.partialorder %v680, 8.507059e+37
    %v682 = vand.u32 %v670, 2147483648
    %v683 = vor.u32 1.1754944e-38, %v682
    %v684 = vsel %vm681, %v683, %v679
    %v685 = vmul.f32 %v660, %v684
    %v686 = vmin.f32 %v685, 1.0
    %v687 = vmax.f32 %v686, -1.0
    %v688 = vmul.f32 %v485, %v485
    %v689 = vmin.f32 16.0, %v688
    %v690 = vmul.f32 %v689, 2.1237322e-06
    %v691 = vadd.f32 %v690, 0.00028619796
    %v692 = vmul.f32 %v689, %v691
    %v693 = vadd.f32 %v692, 0.0036580483
    %v694 = vmul.f32 %v689, %v693
    %v695 = vadd.f32 %v694, 0.05243302
    %v696 = vmul.f32 %v689, %v695
    %v697 = vadd.f32 %v696, 0.18741608
    %v698 = vmul.f32 %v689, %v697
    %v699 = vadd.f32 %v698, 1.1283791
    %v700 = vmul.f32 %v485, %v699
    %v701 = vmul.f32 %v689, 3.8918573e-05
    %v702 = vadd.f32 %v701, 0.001143296
    %v703 = vmul.f32 %v689, %v702
    %v704 = vadd.f32 %v703, 0.014752088
    %v705 = vmul.f32 %v689, %v704
    %v706 = vadd.f32 %v705, 0.112945676
    %v707 = vmul.f32 %v689, %v706
    %v708 = vadd.f32 %v707, 0.4994258
    %v709 = vmul.f32 %v689, %v708
    %v710 = vadd.f32 %v709, 1.0
    %v711 = vrcp.pop %v710
    %v712 = vmul.f32 %v710, %v711
    %v713 = vsub.f32 1.0, %v712
    %v714 = vmul.f32 %v711, %v713
    %v715 = vadd.f32 %v711, %v714
    %vm716 = vweird.f32 %v710
    %vm717 = vweird.f32 %v711
    %vm718 = vmor %vm716, %vm717
    %v719 = vsel %vm718, %v711, %v715
    %v720 = vand.u32 2147483647, %v710
    %vm721 = vcmp.eq.f32.partialorder %v720, 8.507059e+37
    %v722 = vand.u32 %v710, 2147483648
    %v723 = vor.u32 1.1754944e-38, %v722
    %v724 = vsel %vm721, %v723, %v719
    %v725 = vmul.f32 %v700, %v724
    %v726 = vmin.f32 %v725, 1.0
    %v727 = vmax.f32 %v726, -1.0
    %v728 = vmul.f32 %v486, %v486
    %v729 = vmin.f32 16.0, %v728
    %v730 = vmul.f32 %v729, 2.1237322e-06
    %v731 = vadd.f32 %v730, 0.00028619796
    %v732 = vmul.f32 %v729, %v731
    %v733 = vadd.f32 %v732, 0.0036580483
    %v734 = vmul.f32 %v729, %v733
    %v735 = vadd.f32 %v734, 0.05243302
    %v736 = vmul.f32 %v729, %v735
    %v737 = vadd.f32 %v736, 0.18741608
    %v738 = vmul.f32 %v729, %v737
    %v739 = vadd.f32 %v738, 1.1283791
    %v740 = vmul.f32 %v486, %v739
    %v741 = vmul.f32 %v729, 3.8918573e-05
    %v742 = vadd.f32 %v741, 0.001143296
    %v743 = vmul.f32 %v729, %v742
    %v744 = vadd.f32 %v743, 0.014752088
    %v745 = vmul.f32 %v729, %v744
    %v746 = vadd.f32 %v745, 0.112945676
    %v747 = vmul.f32 %v729, %v746
    %v748 = vadd.f32 %v747, 0.4994258
    %v749 = vmul.f32 %v729, %v748
    %v750 = vadd.f32 %v749, 1.0
    %v751 = vrcp.pop %v750
    %v752 = vmul.f32 %v750, %v751
    %v753 = vsub.f32 1.0, %v752
    %v754 = vmul.f32 %v751, %v753
    %v755 = vadd.f32 %v751, %v754
    %vm756 = vweird.f32 %v750
    %vm757 = vweird.f32 %v751
    %vm758 = vmor %vm756, %vm757
    %v759 = vsel %vm758, %v751, %v755
    %v760 = vand.u32 2147483647, %v750
    %vm761 = vcmp.eq.f32.partialorder %v760, 8.507059e+37
    %v762 = vand.u32 %v750, 2147483648
    %v763 = vor.u32 1.1754944e-38, %v762
    %v764 = vsel %vm761, %v763, %v759
    %v765 = vmul.f32 %v740, %v764
    %v766 = vmin.f32 %v765, 1.0
    %v767 = vmax.f32 %v766, -1.0
    %v768 = vmul.f32 %v487, %v487
    %v769 = vmin.f32 16.0, %v768
    %v770 = vmul.f32 %v769, 2.1237322e-06
    %v771 = vadd.f32 %v770, 0.00028619796
    %v772 = vmul.f32 %v769, %v771
    %v773 = vadd.f32 %v772, 0.0036580483
    %v774 = vmul.f32 %v769, %v773
    %v775 = vadd.f32 %v774, 0.05243302
    %v776 = vmul.f32 %v769, %v775
    %v777 = vadd.f32 %v776, 0.18741608
    %v778 = vmul.f32 %v769, %v777
    %v779 = vadd.f32 %v778, 1.1283791
    %v780 = vmul.f32 %v487, %v779
    %v781 = vmul.f32 %v769, 3.8918573e-05
    %v782 = vadd.f32 %v781, 0.001143296
    %v783 = vmul.f32 %v769, %v782
    %v784 = vadd.f32 %v783, 0.014752088
    %v785 = vmul.f32 %v769, %v784
    %v786 = vadd.f32 %v785, 0.112945676
    %v787 = vmul.f32 %v769, %v786
    %v788 = vadd.f32 %v787, 0.4994258
    %v789 = vmul.f32 %v769, %v788
    %v790 = vadd.f32 %v789, 1.0
    %v791 = vrcp.pop %v790
    %v792 = vmul.f32 %v790, %v791
    %v793 = vsub.f32 1.0, %v792
    %v794 = vmul.f32 %v791, %v793
    %v795 = vadd.f32 %v791, %v794
    %vm796 = vweird.f32 %v790
    %vm797 = vweird.f32 %v791
    %vm798 = vmor %vm796, %vm797
    %v799 = vsel %vm798, %v791, %v795
    %v800 = vand.u32 2147483647, %v790
    %vm801 = vcmp.eq.f32.partialorder %v800, 8.507059e+37
    %v802 = vand.u32 %v790, 2147483648
    %v803 = vor.u32 1.1754944e-38, %v802
    %v804 = vsel %vm801, %v803, %v799
    %v805 = vmul.f32 %v780, %v804
    %v806 = vmin.f32 %v805, 1.0
    %v807 = vmax.f32 %v806, -1.0
    %v808 = vadd.f32 %v527, 1.0
    %v809 = vadd.f32 %v567, 1.0
    %v810 = vadd.f32 %v607, 1.0
    %v811 = vadd.f32 %v647, 1.0
    %v812 = vadd.f32 %v687, 1.0
    %v813 = vadd.f32 %v727, 1.0
    %v814 = vadd.f32 %v767, 1.0
    %v815 = vadd.f32 %v807, 1.0
    %v816 = vmul.f32 %v472, %v808
    %v817 = vmul.f32 %v473, %v809
    %v818 = vmul.f32 %v474, %v810
    %v819 = vmul.f32 %v475, %v811
    %v820 = vmul.f32 %v476, %v812
    %v821 = vmul.f32 %v477, %v813
    %v822 = vmul.f32 %v478, %v814
    %v823 = vmul.f32 %v479, %v815
    %v824 = vld [vmem:[%s3] sm:$0xf]
    %v825 = vld [vmem:[%s3 + $0x4] sm:$0xf]
    %v826 = vpack.c.bf16 %v818, %v816
    %v827 = vpack.c.bf16 %v819, %v817
    %v828 = vpack.c.bf16 %v822, %v820
    %v829 = vpack.c.bf16 %v823, %v821
    %v832 = vunpack.c.l.b16 %v824
    %v833 = vunpack.c.l.b16 %v825
    %v834 = vpack.c.b16 %v833, %v832
    %vm835 = vcmask 261120
    %v837 = vsel %vm835, %v834, 0
    %839 = vmatpush.bf16.msra.mxu0 0
    %840 = vmatpush.bf16.msra.mxu0 0
    %841 = vmatpush.bf16.msra.mxu0 0
    %842 = vmatpush.bf16.msra.mxu0 0
    %843 = vmatpush.bf16.msra.mxu0 0
    %844 = vmatpush.bf16.msra.mxu0 0
    %845 = vmatpush.bf16.msra.mxu0 %v828
    %846 = vmatpush.bf16.msra.mxu0 %v826
    %847 = vmatmul.bf16.gmra.mxu0 %v837
    %v848 = vpop.f32.mrf.mxu0
    %v849 = vadd.f32 0.0, %v848
    %v850 = vpop.f32.mrf.mxu0
    %v851 = vadd.f32 0.0, %v850
    %852 = vdwg.mxu0
    %853 = vmatpush.bf16.msra.mxu0 0
    %854 = vmatpush.bf16.msra.mxu0 0
    %855 = vmatpush.bf16.msra.mxu0 0
    %856 = vmatpush.bf16.msra.mxu0 0
    %857 = vmatpush.bf16.msra.mxu0 0
    %858 = vmatpush.bf16.msra.mxu0 0
    %859 = vmatpush.bf16.msra.mxu0 %v829
    %860 = vmatpush.bf16.msra.mxu0 %v827
    %861 = vmatmul.bf16.gmra.mxu0 %v837
    %v862 = vpop.f32.mrf.mxu0
    %v863 = vadd.f32 0.0, %v862
    %v864 = vpop.f32.mrf.mxu0
    %v865 = vadd.f32 0.0, %v864
    %866 = vdwg.mxu0
    %v867 = vpack.c.bf16 %v851, %v849
    %v868 = vpack.c.bf16 %v865, %v863
    %869 = vmatpush.bf16.msra.mxu0 %v282
    %870 = vmatpush.bf16.msra.mxu0 %v280
    %871 = vmatpush.bf16.msra.mxu0 %v278
    %872 = vmatpush.bf16.msra.mxu0 %v276
    %873 = vmatpush.bf16.msra.mxu0 %v274
    %874 = vmatpush.bf16.msra.mxu0 %v272
    %875 = vmatpush.bf16.msra.mxu0 %v270
    %876 = vmatpush.bf16.msra.mxu0 %v268
    %877 = vmatmul.bf16.gmra.mxu0 %v867
    %v878 = vpop.f32.mrf.mxu0
    %v879 = vadd.f32 0.0, %v878
    %v880 = vpop.f32.mrf.mxu0
    %v881 = vadd.f32 0.0, %v880
    %882 = vdwg.mxu0
    %883 = vmatpush.bf16.msra.mxu0 %v298
    %884 = vmatpush.bf16.msra.mxu0 %v296
    %885 = vmatpush.bf16.msra.mxu0 %v294
    %886 = vmatpush.bf16.msra.mxu0 %v292
    %887 = vmatpush.bf16.msra.mxu0 %v290
    %888 = vmatpush.bf16.msra.mxu0 %v288
    %889 = vmatpush.bf16.msra.mxu0 %v286
    %890 = vmatpush.bf16.msra.mxu0 %v284
    %891 = vmatmul.bf16.gmra.mxu0 %v868
    %v892 = vpop.f32.mrf.mxu0
    %v893 = vadd.f32 %v879, %v892
    %v894 = vpop.f32.mrf.mxu0
    %v895 = vadd.f32 %v881, %v894
    %896 = vdwg.mxu0
    %897 = vmatpush.bf16.msra.mxu0 %v283
    %898 = vmatpush.bf16.msra.mxu0 %v281
    %899 = vmatpush.bf16.msra.mxu0 %v279
    %900 = vmatpush.bf16.msra.mxu0 %v277
    %901 = vmatpush.bf16.msra.mxu0 %v275
    %902 = vmatpush.bf16.msra.mxu0 %v273
    %903 = vmatpush.bf16.msra.mxu0 %v271
    %904 = vmatpush.bf16.msra.mxu0 %v269
    %905 = vmatmul.bf16.gmra.mxu0 %v867
    %v906 = vpop.f32.mrf.mxu0
    %v907 = vadd.f32 0.0, %v906
    %v908 = vpop.f32.mrf.mxu0
    %v909 = vadd.f32 0.0, %v908
    %910 = vdwg.mxu0
    %911 = vmatpush.bf16.msra.mxu0 %v299
    %912 = vmatpush.bf16.msra.mxu0 %v297
    %913 = vmatpush.bf16.msra.mxu0 %v295
    %914 = vmatpush.bf16.msra.mxu0 %v293
    %915 = vmatpush.bf16.msra.mxu0 %v291
    %916 = vmatpush.bf16.msra.mxu0 %v289
    %917 = vmatpush.bf16.msra.mxu0 %v287
    %918 = vmatpush.bf16.msra.mxu0 %v285
    %919 = vmatmul.bf16.gmra.mxu0 %v868
    %v920 = vpop.f32.mrf.mxu0
    %v921 = vadd.f32 %v907, %v920
    %v922 = vpop.f32.mrf.mxu0
    %v923 = vadd.f32 %v909, %v922
    %924 = vdwg.mxu0
    %v925 = vld [vmem:[%s6] sm:$0xff]
    %v926 = vld [vmem:[%s6 + $0x8] sm:$0xff]
    %928 = vset.pattern.permute.xlu0 0
    %929 = vperm.xlu0 %928, %v925
    %v930 = vpop.permute.xlu0 %929
    %933 = vset.pattern.permute.xlu0 0
    %934 = vperm.xlu0 %933, %v926
    %v935 = vpop.permute.xlu0 %934
    %v937 = vmul.f32 %v893, %v930
    %v938 = vmul.f32 %v921, %v930
    %v939 = vmul.f32 %v895, %v935
    %v940 = vmul.f32 %v923, %v935
    %v941 = vld [vmem:[%s7] sm:$0xff]
    %v942 = vld [vmem:[%s7 + $0x8] sm:$0xff]
    %944 = vset.pattern.permute.xlu0 0
    %945 = vperm.xlu0 %944, %v941
    %v946 = vpop.permute.xlu0 %945
    %949 = vset.pattern.permute.xlu0 0
    %950 = vperm.xlu0 %949, %v942
    %v951 = vpop.permute.xlu0 %950
    %v953 = vadd.f32 %v937, %v946
    %v954 = vadd.f32 %v938, %v946
    %v955 = vadd.f32 %v939, %v951
    %v956 = vadd.f32 %v940, %v951
    %v957 = vadd.f32 %v953, %v140
    %v958 = vadd.f32 %v954, %v164
    %v959 = vadd.f32 %v955, %v142
    %v960 = vadd.f32 %v956, %v166
    %961 = vst [vmem:[#allocation5] sm:$0xff] %v957
    %962 = vst [vmem:[#allocation5 + $0x8] sm:$0xff] %v958
    %963 = vst [vmem:[#allocation5 + $0x10] sm:$0xff] %v959
    %964 = vst [vmem:[#allocation5 + $0x18] sm:$0xff] %v960
    // Predicated region
    $region38: #{image_gae_encoder.1} parent=1 // pred_check
      _
    $region39: #{image_gae_encoder.1} parent=1 // pred_check_branch
      %966 = sbr.rel (0) target = $region41
    $region40: #{image_gae_encoder.1} parent=1 // pred_region
      %968 = vsyncadd [#allocation4], 0
      %s969 = sshll.u32 [#allocation5], 4
      %s970 = int_to_ptr.vmem [resolvable:$true] %s969
      %s971 = sshll.u32 %s8, 4
      %s972 = int_to_ptr.hbm [resolvable:$true] %s971
      %977 = dma.vmem_to_hbm [thread:$0]  %s970, 512, %s972, [#allocation4], 256, 256, 16
    $region41: #{image_gae_encoder.1} parent=1 // pred_fallthru
      _
    // Predicated region
    $region42: #{image_gae_encoder.1} parent=1 // pred_check
      _
    $region43: #{image_gae_encoder.1} parent=1 // pred_check_branch
      %979 = sbr.rel (0) target = $region45
    $region44: #{image_gae_encoder.1} parent=1 // pred_region
      %981 = dma.done [#allocation4], 512
    $region45: #{image_gae_encoder.1} parent=1 // pred_fallthru
      _
    %982 = vsyncpa [#allocation3], 1
    %983 = vsyncpa [#allocation4], 1

</llo_original>
